<compile_context>
chip_gen: v6e
topology: v6e:2x2x1
jax: 0.10.0
libtpu: 0.0.40
codegen_flags: <defaults>
</compile_context>

<pallas_src>
import numpy as np
import jax
import jax.numpy as jnp
from jax.experimental import pallas as pl
from jax.experimental.pallas import tpu as pltpu


def _round_up(x, m):
    return ((x + m - 1) // m) * m


def _adaptive_avgpool_matrix(L, M):
    """[M, L] matrix replicating torch.nn.AdaptiveAvgPool1d(M) on length L."""
    P = np.zeros((M, L), dtype=np.float32)
    for m in range(M):
        start = (m * L) // M
        end = -((-(m + 1) * L) // M)        # ceil((m+1)*L / M)
        P[m, start:end] = 1.0 / (end - start)
    return P


def _deeplncloc_kernel(ids_ref, emb_ref, pbd_ref, w_ref, b_ref, mask_ref,
                       out_ref):
    # ids_ref : [TB*L, 1]        int32  k-mer ids of this batch tile (row = b*L + l)
    # emb_ref : [Vp, E]          f32    zero-padded w2v table (VMEM resident)
    # pbd_ref : [Msrc*TB, TB*L]  f32    block-diag adaptive-avg-pool matrix
    # w_ref   : [Kmax*E, nFp]    bf16   fused conv weights (row = dk*E + e)
    # b_ref   : [1, nFp]         f32    fused conv bias (zero in padded channels)
    # mask_ref: [T*TB, nFp]      f32    valid-position mask (row = t*TB + b)
    # out_ref : [TB, nFp]        f32
    RL = ids_ref.shape[0]                       # TB * L
    Vp, E = emb_ref.shape
    TB, nFp = out_ref.shape
    Kmax = w_ref.shape[0] // E
    T = mask_ref.shape[0] // TB
    Msrc = pbd_ref.shape[0] // TB

    # (1) Fused embedding gather: exact one-hot (f32) MXU matmul against the
    #     resident table -- no [B, L, E] HBM round trip.
    ids = ids_ref[...]                                             # [TB*L, 1]
    viota = jax.lax.broadcasted_iota(jnp.int32, (RL, Vp), 1)       # lane iota
    onehot = (ids == viota).astype(jnp.float32)                    # [TB*L, Vp]
    x = jnp.dot(onehot, emb_ref[...],
                preferred_element_type=jnp.float32)                # [TB*L, E]

    # (2) Adaptive average pooling for the whole tile in ONE matmul; the
    #     block-diagonal pooling matrix also reorders rows to (m, b) so the
    #     conv windows below are free leading-dim slices.  Kept in f32 for
    #     parity with the PyTorch f32 path (per review correctness note).
    pooled = jnp.dot(pbd_ref[...], x,
                     preferred_element_type=jnp.float32)           # [Msrc*TB, E]
    pooled = pooled.reshape(Msrc, TB, E)

    # (3,4,5) im2col over the Kmax kernel offsets (free leading-dim slices,
    #     one lane concat), single bf16 cast, single fused conv MXU matmul.
    lhs = jnp.concatenate([pooled[dk:dk + T] for dk in range(Kmax)], axis=2)
    lhs = lhs.reshape(T * TB, Kmax * E).astype(jnp.bfloat16)       # hoisted cast
    s = jnp.dot(lhs, w_ref[...],
                preferred_element_type=jnp.float32)                # [T*TB, nFp]

    # (6) bias + ReLU, mask invalid positions AFTER ReLU (exact: ReLU >= 0 and
    #     every branch has a non-empty valid set), one max-reduction over the
    #     position axis and one dense lane-aligned (TB, nFp) store.
    s = jnp.maximum(s + b_ref[...], 0.0) * mask_ref[...]
    out_ref[...] = jnp.max(s.reshape(T, TB, nFp), axis=0)


def deeplncloc_forward(kmers_id, w2v_emb, conv_weights, conv_biases,
                       merge_win_size, context_size_list, *, batch_tile=8):
    B, L = kmers_id.shape
    V, E = w2v_emb.shape
    n_branch = len(context_size_list)
    F = conv_weights[0].shape[0]
    out_size = n_branch * F
    ks = [int(k) for k in context_size_list]
    Kmax = max(ks)
    M = int(merge_win_size)
    assert M >= Kmax, "merge_win_size must be >= max context size"

    nFp = _round_up(out_size, 128)      # lane-dense output channels
    T = M                               # conv output positions (leading dim, no pad needed)
    Msrc = M + Kmax - 1                 # pooled rows incl. zero-padding rows
    Vp = _round_up(V, 128)              # lane-dense one-hot / padded table rows

    # (7,9) batch tile: multiple of 8, and keep >= 2 grid steps when the batch
    # allows so ("parallel",) shards across both v7x TensorCores.
    TB = max(8, (int(batch_tile) // 8) * 8)
    B8 = _round_up(B, 8)
    TB = min(TB, max(8, (B8 // 16) * 8))
    B_pad = _round_up(max(B, TB), TB)

    # ids: pad batch, flatten to a column so each grid step sees a [TB*L, 1]
    # block (int32: ~E*? less HBM traffic than the old bf16 activations).
    ids = jnp.pad(kmers_id.astype(jnp.int32), ((0, B_pad - B), (0, 0)))
    ids_col = ids.reshape(B_pad * L, 1)

    # Embedding table in f32 (one-hot gather is then exact), zero-padded rows.
    emb = jnp.pad(w2v_emb.astype(jnp.float32), ((0, Vp - V), (0, 0)))

    # Block-diagonal adaptive-avg-pool matrix:
    #   Pbd[m*TB + b, b*L + l] = P[m, l]   (rows m >= M stay zero = padding)
    P = _adaptive_avgpool_matrix(L, M)                            # [M, L]
    Pbd_np = np.zeros((Msrc * TB, TB * L), np.float32)
    for m in range(M):
        for b in range(TB):
            Pbd_np[m * TB + b, b * L:(b + 1) * L] = P[m]
    Pbd = jnp.asarray(Pbd_np)

    # Fuse all Conv1d branches: torch layout [F, E, k] -> [Kmax*E, nFp] with
    # zero rows/columns for missing offsets / padded channels.
    W_np = np.zeros((Kmax * E, nFp), np.float32)
    bias_np = np.zeros((1, nFp), np.float32)
    for i, (w, k) in enumerate(zip(conv_weights, ks)):
        w_np = np.asarray(w, np.float32)                          # [F, E, k]
        for dk in range(k):
            W_np[dk * E:(dk + 1) * E, i * F:(i + 1) * F] = w_np[:, :, dk].T
        bias_np[0, i * F:(i + 1) * F] = np.asarray(conv_biases[i], np.float32)
    Wb = jnp.asarray(W_np, jnp.bfloat16)
    bias = jnp.asarray(bias_np)

    # Valid-position mask (row = t*TB + b): Conv1d(k) has M - k + 1 valid outputs.
    mask_np = np.zeros((T * TB, nFp), np.float32)
    for i, k in enumerate(ks):
        for t in range(M - k + 1):
            mask_np[t * TB:(t + 1) * TB, i * F:(i + 1) * F] = 1.0
    mask = jnp.asarray(mask_np)

    steps = B_pad // TB
    flops = 2 * steps * ((TB * L) * Vp * E            # one-hot gather matmul
                         + (Msrc * TB) * (TB * L) * E  # pooling matmul
                         + (T * TB) * (Kmax * E) * nFp)  # fused conv matmul
    bytes_accessed = int(ids_col.size * 4 + emb.size * 4 + Pbd.size * 4
                         + Wb.size * 2 + bias.size * 4 + mask.size * 4
                         + B_pad * nFp * 4)

    out = pl.pallas_call(
        _deeplncloc_kernel,
        out_shape=jax.ShapeDtypeStruct((B_pad, nFp), jnp.float32),
        grid=(steps,),
        in_specs=[
            pl.BlockSpec((TB * L, 1), lambda i: (i, 0)),       # ids (per tile)
            pl.BlockSpec((Vp, E), lambda i: (0, 0)),           # table (resident)
            pl.BlockSpec((Msrc * TB, TB * L), lambda i: (0, 0)),  # pool matrix
            pl.BlockSpec((Kmax * E, nFp), lambda i: (0, 0)),   # fused conv W
            pl.BlockSpec((1, nFp), lambda i: (0, 0)),          # fused bias
            pl.BlockSpec((T * TB, nFp), lambda i: (0, 0)),     # position mask
        ],
        out_specs=pl.BlockSpec((TB, nFp), lambda i: (i, 0)),
        compiler_params=pltpu.CompilerParams(
            dimension_semantics=("parallel",),
            # Resident operands + double-buffered ids/out are < 1 MiB here;
            # 32 MiB keeps plenty of headroom even on v7x (64 MiB physical).
            vmem_limit_bytes=32 * 1024 * 1024),
        cost_estimate=pl.CostEstimate(flops=int(flops), transcendentals=0,
                                      bytes_accessed=bytes_accessed),
    )(ids_col, emb, Pbd, Wb, bias, mask)
    return out[:B, :out_size]


def _reference(kmers_id, w2v_emb, conv_weights, conv_biases,
               merge_win_size, context_size_list):
    """Pure-JAX f32 replica of the PyTorch forward (eval mode)."""
    x = jnp.take(w2v_emb, kmers_id, axis=0)                       # [B, L, E]
    x = jnp.transpose(x, (0, 2, 1))                               # [B, E, L]
    L = x.shape[2]
    M = int(merge_win_size)
    P = jnp.asarray(_adaptive_avgpool_matrix(L, M), jnp.float32)  # [M, L]
    x = jnp.einsum('bel,ml->bem', x, P,
                   precision=jax.lax.Precision.HIGHEST)           # [B, E, M]
    outs = []
    for w, b in zip(conv_weights, conv_biases):
        y = jax.lax.conv_general_dilated(
            x, w, window_strides=(1,), padding='VALID',
            dimension_numbers=('NCH', 'OIH', 'NCH'),
            precision=jax.lax.Precision.HIGHEST)
        y = y + b[None, :, None]
        y = jnp.maximum(y, 0.0)
        y = jnp.max(y, axis=2)                                    # AdaptiveMaxPool1d(1)
        outs.append(y)
    return jnp.concatenate(outs, axis=1)


if __name__ == "__main__":
    # Small deterministic shapes consistent with the module.
    vocab_size = 32
    emb_dim = 32            # w2v_emb.shape[1]
    batch = 16              # -> 2 grid steps with TB=8 (both v7x TCs busy)
    seq_len = 16            # number of k-mers
    merge_win_size = 8
    context_size_list = [1, 2, 3]
    out_size = 24           # divisible by len(context_size_list)
    filter_out = out_size // len(context_size_list)
    dropout = 0.1           # eval mode: dropout is identity

    key = jax.random.PRNGKey(0)
    k_emb, k_ids, k_w, k_b = jax.random.split(key, 4)

    w2v_emb = jax.random.normal(k_emb, (vocab_size, emb_dim), dtype=jnp.float32)
    kmers_id = jax.random.randint(k_ids, (batch, seq_len), 0, vocab_size,
                                  dtype=jnp.int32)

    conv_weights = []
    conv_biases = []
    for i, ksz in enumerate(context_size_list):
        kw = jax.random.fold_in(k_w, i)
        kb = jax.random.fold_in(k_b, i)
        conv_weights.append(
            0.1 * jax.random.normal(kw, (filter_out, emb_dim, ksz),
                                    dtype=jnp.float32))
        conv_biases.append(
            0.1 * jax.random.normal(kb, (filter_out,), dtype=jnp.float32))

    out = deeplncloc_forward(kmers_id, w2v_emb, conv_weights, conv_biases,
                             merge_win_size, context_size_list)
    out = jax.block_until_ready(out)

    ref = _reference(kmers_id, w2v_emb, conv_weights, conv_biases,
                     merge_win_size, context_size_list)
    ref = jax.block_until_ready(ref)

    assert out.shape == (batch, out_size), out.shape
    # Gather + pooling are exact f32; only the conv matmul uses bf16 inputs
    # with f32 accumulation -> comfortable tolerance.
    np.testing.assert_allclose(np.asarray(out), np.asarray(ref),
                               rtol=2e-2, atol=2e-2)
    print("KERNEL_OK")
</pallas_src>

<mosaic_0001>
module attributes {stable_mosaic.version = 11 : i64} {
  func.func @_deeplncloc_kernel(%arg0: i32, %arg1: memref<128x1xi32, #tpu.memory_space<vmem>>, %arg2: memref<128x32xf32, #tpu.memory_space<vmem>>, %arg3: memref<80x128xf32, #tpu.memory_space<vmem>>, %arg4: memref<96x128xbf16, #tpu.memory_space<vmem>>, %arg5: memref<1x128xf32, #tpu.memory_space<vmem>>, %arg6: memref<64x128xf32, #tpu.memory_space<vmem>>, %arg7: memref<8x128xf32, #tpu.memory_space<vmem>>) attributes {dimension_semantics = [#tpu.dimension_semantics<parallel>], iteration_bounds = array<i64: 2>, scalar_prefetch = 0 : i64, scratch_operands = 0 : i64, tpu.core_type = #tpu.core_type<tc>, window_params = [{transform_indices = @transform_0, window_bounds = array<i64: 128, 1>}, {pipeline_mode = #tpu.pipeline_mode<synchronous>, transform_indices = @transform_1, window_bounds = array<i64: 128, 32>}, {pipeline_mode = #tpu.pipeline_mode<synchronous>, transform_indices = @transform_2, window_bounds = array<i64: 80, 128>}, {pipeline_mode = #tpu.pipeline_mode<synchronous>, transform_indices = @transform_3, window_bounds = array<i64: 96, 128>}, {pipeline_mode = #tpu.pipeline_mode<synchronous>, transform_indices = @transform_4, window_bounds = array<i64: 1, 128>}, {pipeline_mode = #tpu.pipeline_mode<synchronous>, transform_indices = @transform_5, window_bounds = array<i64: 64, 128>}, {transform_indices = @transform_6, window_bounds = array<i64: 8, 128>}]} {
    %c0 = arith.constant 0 : index
    %c0_0 = arith.constant 0 : index
    %0 = vector.load %arg1[%c0, %c0_0] : memref<128x1xi32, #tpu.memory_space<vmem>>, vector<128x1xi32>
    %1 = tpu.iota {dimensions = array<i32: 1>} : vector<128x128xi32>
    %2 = vector.broadcast %0 : vector<128x1xi32> to vector<128x128xi32>
    %3 = arith.cmpi eq, %2, %1 : vector<128x128xi32>
    %4 = arith.extui %3 : vector<128x128xi1> to vector<128x128xi32>
    %5 = arith.sitofp %4 : vector<128x128xi32> to vector<128x128xf32>
    %c0_1 = arith.constant 0 : index
    %c0_2 = arith.constant 0 : index
    %6 = vector.load %arg2[%c0_1, %c0_2] : memref<128x32xf32, #tpu.memory_space<vmem>>, vector<128x32xf32>
    %cst = arith.constant dense<0.000000e+00> : vector<128x32xf32>
    %7 = tpu.matmul %5, %6, %cst {dimension_numbers = #tpu.dot_dimension_numbers<[1], [0], [0], [1], [0, 0, 1, 1], [], []>} : vector<128x128xf32>, vector<128x32xf32>, vector<128x32xf32> -> vector<128x32xf32>
    %c0_3 = arith.constant 0 : index
    %c0_4 = arith.constant 0 : index
    %8 = vector.load %arg3[%c0_3, %c0_4] : memref<80x128xf32, #tpu.memory_space<vmem>>, vector<80x128xf32>
    %cst_5 = arith.constant dense<0.000000e+00> : vector<80x32xf32>
    %9 = tpu.matmul %8, %7, %cst_5 {dimension_numbers = #tpu.dot_dimension_numbers<[1], [0], [0], [1], [0, 0, 1, 1], [], []>} : vector<80x128xf32>, vector<128x32xf32>, vector<80x32xf32> -> vector<80x32xf32>
    %10 = vector.shape_cast %9 : vector<80x32xf32> to vector<10x8x32xf32>
    %11 = vector.extract_strided_slice %10 {offsets = [0, 0, 0], sizes = [8, 8, 32], strides = [1, 1, 1]} : vector<10x8x32xf32> to vector<8x8x32xf32>
    %12 = vector.extract_strided_slice %10 {offsets = [1, 0, 0], sizes = [8, 8, 32], strides = [1, 1, 1]} : vector<10x8x32xf32> to vector<8x8x32xf32>
    %13 = vector.extract_strided_slice %10 {offsets = [2, 0, 0], sizes = [8, 8, 32], strides = [1, 1, 1]} : vector<10x8x32xf32> to vector<8x8x32xf32>
    %14 = tpu.concatenate %11, %12, %13 in 2 : vector<8x8x32xf32>, vector<8x8x32xf32>, vector<8x8x32xf32> -> vector<8x8x96xf32>
    %15 = vector.shape_cast %14 : vector<8x8x96xf32> to vector<64x96xf32>
    %16 = arith.truncf %15 : vector<64x96xf32> to vector<64x96xbf16>
    %c0_6 = arith.constant 0 : index
    %c0_7 = arith.constant 0 : index
    %17 = vector.load %arg4[%c0_6, %c0_7] : memref<96x128xbf16, #tpu.memory_space<vmem>>, vector<96x128xbf16>
    %cst_8 = arith.constant dense<0.000000e+00> : vector<64x128xf32>
    %18 = tpu.matmul %16, %17, %cst_8 {dimension_numbers = #tpu.dot_dimension_numbers<[1], [0], [0], [1], [0, 0, 1, 1], [], []>} : vector<64x96xbf16>, vector<96x128xbf16>, vector<64x128xf32> -> vector<64x128xf32>
    %c0_9 = arith.constant 0 : index
    %c0_10 = arith.constant 0 : index
    %19 = vector.load %arg5[%c0_9, %c0_10] : memref<1x128xf32, #tpu.memory_space<vmem>>, vector<1x128xf32>
    %20 = vector.broadcast %19 : vector<1x128xf32> to vector<64x128xf32>
    %21 = arith.addf %18, %20 : vector<64x128xf32>
    %cst_11 = arith.constant 0.000000e+00 : f32
    %22 = vector.broadcast %cst_11 : f32 to vector<64x128xf32>
    %23 = arith.maximumf %21, %22 : vector<64x128xf32>
    %c0_12 = arith.constant 0 : index
    %c0_13 = arith.constant 0 : index
    %24 = vector.load %arg6[%c0_12, %c0_13] : memref<64x128xf32, #tpu.memory_space<vmem>>, vector<64x128xf32>
    %25 = arith.mulf %23, %24 : vector<64x128xf32>
    %26 = vector.shape_cast %25 : vector<64x128xf32> to vector<8x8x128xf32>
    %cst_14 = arith.constant dense<0xFF800000> : vector<8x128xf32>
    %27 = vector.multi_reduction <maximumf>, %26, %cst_14 [0] : vector<8x8x128xf32> to vector<8x128xf32>
    %c0_15 = arith.constant 0 : index
    %c0_16 = arith.constant 0 : index
    %28 = vector.load %arg7[%c0_15, %c0_16] : memref<8x128xf32, #tpu.memory_space<vmem>>, vector<8x128xf32>
    tpu.vector_store %arg7[%c0_15, %c0_16], %27 {strides = array<i32>} : memref<8x128xf32, #tpu.memory_space<vmem>>, vector<8x128xf32>,
    return
  }
  func.func @transform_0(%arg0: i32) -> (i32, i32) {
    %c0_i32 = arith.constant 0 : i32
    %c0_i32_0 = arith.constant 0 : i32
    return %arg0, %c0_i32 : i32, i32
  }
  func.func @transform_1(%arg0: i32) -> (i32, i32) {
    %c0_i32 = arith.constant 0 : i32
    %c0_i32_0 = arith.constant 0 : i32
    %c0_i32_1 = arith.constant 0 : i32
    return %c0_i32, %c0_i32_0 : i32, i32
  }
  func.func @transform_2(%arg0: i32) -> (i32, i32) {
    %c0_i32 = arith.constant 0 : i32
    %c0_i32_0 = arith.constant 0 : i32
    %c0_i32_1 = arith.constant 0 : i32
    return %c0_i32, %c0_i32_0 : i32, i32
  }
  func.func @transform_3(%arg0: i32) -> (i32, i32) {
    %c0_i32 = arith.constant 0 : i32
    %c0_i32_0 = arith.constant 0 : i32
    %c0_i32_1 = arith.constant 0 : i32
    return %c0_i32, %c0_i32_0 : i32, i32
  }
  func.func @transform_4(%arg0: i32) -> (i32, i32) {
    %c0_i32 = arith.constant 0 : i32
    %c0_i32_0 = arith.constant 0 : i32
    %c0_i32_1 = arith.constant 0 : i32
    return %c0_i32, %c0_i32_0 : i32, i32
  }
  func.func @transform_5(%arg0: i32) -> (i32, i32) {
    %c0_i32 = arith.constant 0 : i32
    %c0_i32_0 = arith.constant 0 : i32
    %c0_i32_1 = arith.constant 0 : i32
    return %c0_i32, %c0_i32_0 : i32, i32
  }
  func.func @transform_6(%arg0: i32) -> (i32, i32) {
    %c0_i32 = arith.constant 0 : i32
    %c0_i32_0 = arith.constant 0 : i32
    return %arg0, %c0_i32 : i32, i32
  }
}

</mosaic_0001>

<llo_original>
// kernel: tpu_custom_call.1
$region0: #{tpu_custom_call.1}
  #allocation0 [shape = 'u32[]', space=smem, size = 0x4, offset = 0x4, fixed_abs, tag = 'smem constant byte address 0x4 - core index']
  #allocation1 [shape = 'u32[144,128]{1,0:T(1,128)}', space=vmem, size = 0x12000, scoped, tag = 'internal scratch']
  %s0 = inlined_call_operand.vmem [shape: s32[256,1], index: 0, kind: input, shape index: {}]
  %s1 = inlined_call_operand.vmem [shape: f32[128,32], index: 1, kind: input, shape index: {}]
  %s2 = inlined_call_operand.vmem [shape: f32[80,128], index: 2, kind: input, shape index: {}]
  %s3 = inlined_call_operand.vmem [shape: bf16[96,128], index: 3, kind: input, shape index: {}]
  %s4 = inlined_call_operand.vmem [shape: f32[1,128], index: 4, kind: input, shape index: {}]
  %s5 = inlined_call_operand.vmem [shape: f32[64,128], index: 5, kind: input, shape index: {}]
  %s6 = inlined_call_operand.hbm [shape: f32[16,128], index: 6, kind: output, shape index: {}]
  %s7 = sld [smem:[#allocation0]]
  $region57: #{tpu_custom_call.1} parent=0
    _
  %s9 = ssub.s32 1, %s7
  %s10 = scalar_select 0, %s9, %s7
  $region1: #{tpu_custom_call.1} parent=0
    #allocation2 [shape = 'u8[8192]{0}', space=vmem, size = 0x2000, scoped, tag = 'output window, operand 0']
    #allocation3 [shape = 's32[2]{0}', space=sflag, size = 0x8, scoped, tag = 'scoped memory for tpu_custom_call.1']
    %11 = vsyncpa [#allocation3], 0
    %s12 = scalar_lea.sflag [#allocation3], 1
    %13 = vsyncpa %s12, 0
    loop: start=0, step=1, limit=4
    $region2: #{tpu_custom_call.1} parent=1 // loop_pre_header
      _
    $region3: #{tpu_custom_call.1} parent=1 // loop_header
      %s15 = sphi 0, %s19
      %p16 = scmp.ge.s32.totalorder %s15, 4
      %s25 = sphi 0, %s27
      %s28 = sphi 0, %s25
      %s29 = sphi 0, %s28
      %s45 = sphi 0, %s29
      %s49 = sphi 0, %s49
      %s51 = sphi 0, %s49
      %s52 = sphi 0, %s51
      %s66 = sphi 0, %s52
      %s70 = sphi 0, %s70
      %s72 = sphi 0, %s70
      %s73 = sphi 0, %s72
      %s87 = sphi 0, %s73
      %s91 = sphi 0, %s91
      %s93 = sphi 0, %s91
      %s94 = sphi 0, %s93
      %s108 = sphi 0, %s94
      %s112 = sphi 0, %s112
      %s114 = sphi 0, %s112
      %s115 = sphi 0, %s114
      %s129 = sphi 0, %s115
      %s133 = sphi 0, %s133
      %s135 = sphi 0, %s133
      %s136 = sphi 0, %s135
      %s150 = sphi 0, %s136
      %s156 = sphi 0, %s158
      %s159 = sphi 0, %s156
      %s160 = sphi 0, %s159
      %s176 = sphi 0, %s160
    $region4: #{tpu_custom_call.1} parent=1 // loop_header_branch
      %18 = sbr.rel (%p16) target = $region8
    $region5: #{tpu_custom_call.1} parent=1 // loop_body
      %s20 = ssub.s32 %s15, 1
      %s21 = ssub.s32 %s15, 2
      %s22 = sadd.s32 %s15, 1
      %s23 = ssub.s32 %s15, %s22
      %p24 = scmp.eq.s32.totalorder %s23, 0
      %s26 = sadd.s32 %s25, 1
      %s27 = scalar_select %p24, %s25, %s26
      %p30 = pneg %p24
      %p31 = scmp.eq.s32.totalorder %s15, 1
      %p32 = por %p30, %p31
      %p33 = scmp.ne.s32.totalorder %s25, %s28
      %p34 = scmp.eq.s32.totalorder %s15, 0
      %p35 = por %p33, %p34
      %p36 = scmp.ne.s32.totalorder %s25, %s28
      %p37 = scmp.eq.s32.totalorder %s20, 1
      %p38 = por %p36, %p37
      %p39 = scmp.ne.s32.totalorder %s28, %s29
      %p40 = scmp.eq.s32.totalorder %s20, 0
      %p41 = por %p39, %p40
      %p42 = scmp.ne.s32.totalorder %s28, %s29
      %p43 = scmp.eq.s32.totalorder %s21, 1
      %p44 = por %p42, %p43
      %p46 = scmp.ne.s32.totalorder %s29, %s45
      %p47 = scmp.eq.s32.totalorder %s21, 0
      %p48 = por %p46, %p47
      %s50 = sadd.s32 %s49, 1
      %p53 = scmp.eq.s32.totalorder %s15, 1
      %p54 = scmp.ne.s32.totalorder %s49, %s51
      %p55 = scmp.eq.s32.totalorder %s15, 0
      %p56 = por %p54, %p55
      %p57 = scmp.ne.s32.totalorder %s49, %s51
      %p58 = scmp.eq.s32.totalorder %s20, 1
      %p59 = por %p57, %p58
      %p60 = scmp.ne.s32.totalorder %s51, %s52
      %p61 = scmp.eq.s32.totalorder %s20, 0
      %p62 = por %p60, %p61
      %p63 = scmp.ne.s32.totalorder %s51, %s52
      %p64 = scmp.eq.s32.totalorder %s21, 1
      %p65 = por %p63, %p64
      %p67 = scmp.ne.s32.totalorder %s52, %s66
      %p68 = scmp.eq.s32.totalorder %s21, 0
      %p69 = por %p67, %p68
      %s71 = sadd.s32 %s70, 1
      %p74 = scmp.eq.s32.totalorder %s15, 1
      %p75 = scmp.ne.s32.totalorder %s70, %s72
      %p76 = scmp.eq.s32.totalorder %s15, 0
      %p77 = por %p75, %p76
      %p78 = scmp.ne.s32.totalorder %s70, %s72
      %p79 = scmp.eq.s32.totalorder %s20, 1
      %p80 = por %p78, %p79
      %p81 = scmp.ne.s32.totalorder %s72, %s73
      %p82 = scmp.eq.s32.totalorder %s20, 0
      %p83 = por %p81, %p82
      %p84 = scmp.ne.s32.totalorder %s72, %s73
      %p85 = scmp.eq.s32.totalorder %s21, 1
      %p86 = por %p84, %p85
      %p88 = scmp.ne.s32.totalorder %s73, %s87
      %p89 = scmp.eq.s32.totalorder %s21, 0
      %p90 = por %p88, %p89
      %s92 = sadd.s32 %s91, 1
      %p95 = scmp.eq.s32.totalorder %s15, 1
      %p96 = scmp.ne.s32.totalorder %s91, %s93
      %p97 = scmp.eq.s32.totalorder %s15, 0
      %p98 = por %p96, %p97
      %p99 = scmp.ne.s32.totalorder %s91, %s93
      %p100 = scmp.eq.s32.totalorder %s20, 1
      %p101 = por %p99, %p100
      %p102 = scmp.ne.s32.totalorder %s93, %s94
      %p103 = scmp.eq.s32.totalorder %s20, 0
      %p104 = por %p102, %p103
      %p105 = scmp.ne.s32.totalorder %s93, %s94
      %p106 = scmp.eq.s32.totalorder %s21, 1
      %p107 = por %p105, %p106
      %p109 = scmp.ne.s32.totalorder %s94, %s108
      %p110 = scmp.eq.s32.totalorder %s21, 0
      %p111 = por %p109, %p110
      %s113 = sadd.s32 %s112, 1
      %p116 = scmp.eq.s32.totalorder %s15, 1
      %p117 = scmp.ne.s32.totalorder %s112, %s114
      %p118 = scmp.eq.s32.totalorder %s15, 0
      %p119 = por %p117, %p118
      %p120 = scmp.ne.s32.totalorder %s112, %s114
      %p121 = scmp.eq.s32.totalorder %s20, 1
      %p122 = por %p120, %p121
      %p123 = scmp.ne.s32.totalorder %s114, %s115
      %p124 = scmp.eq.s32.totalorder %s20, 0
      %p125 = por %p123, %p124
      %p126 = scmp.ne.s32.totalorder %s114, %s115
      %p127 = scmp.eq.s32.totalorder %s21, 1
      %p128 = por %p126, %p127
      %p130 = scmp.ne.s32.totalorder %s115, %s129
      %p131 = scmp.eq.s32.totalorder %s21, 0
      %p132 = por %p130, %p131
      %s134 = sadd.s32 %s133, 1
      %p137 = scmp.eq.s32.totalorder %s15, 1
      %p138 = scmp.ne.s32.totalorder %s133, %s135
      %p139 = scmp.eq.s32.totalorder %s15, 0
      %p140 = por %p138, %p139
      %p141 = scmp.ne.s32.totalorder %s133, %s135
      %p142 = scmp.eq.s32.totalorder %s20, 1
      %p143 = por %p141, %p142
      %p144 = scmp.ne.s32.totalorder %s135, %s136
      %p145 = scmp.eq.s32.totalorder %s20, 0
      %p146 = por %p144, %p145
      %p147 = scmp.ne.s32.totalorder %s135, %s136
      %p148 = scmp.eq.s32.totalorder %s21, 1
      %p149 = por %p147, %p148
      %p151 = scmp.ne.s32.totalorder %s136, %s150
      %p152 = scmp.eq.s32.totalorder %s21, 0
      %p153 = por %p151, %p152
      %s154 = ssub.s32 %s15, %s22
      %p155 = scmp.eq.s32.totalorder %s154, 0
      %s157 = sadd.s32 %s156, 1
      %s158 = scalar_select %p155, %s156, %s157
      %p161 = pneg %p155
      %p162 = scmp.eq.s32.totalorder %s15, 1
      %p163 = por %p161, %p162
      %p164 = scmp.ne.s32.totalorder %s156, %s159
      %p165 = scmp.eq.s32.totalorder %s15, 0
      %p166 = por %p164, %p165
      %p167 = scmp.ne.s32.totalorder %s156, %s159
      %p168 = scmp.eq.s32.totalorder %s20, 1
      %p169 = por %p167, %p168
      %p170 = scmp.ne.s32.totalorder %s159, %s160
      %p171 = scmp.eq.s32.totalorder %s20, 0
      %p172 = por %p170, %p171
      %p173 = scmp.ne.s32.totalorder %s159, %s160
      %p174 = scmp.eq.s32.totalorder %s21, 1
      %p175 = por %p173, %p174
      %p177 = scmp.ne.s32.totalorder %s160, %s176
      %p178 = scmp.eq.s32.totalorder %s21, 0
      %p179 = por %p177, %p178
      %p180 = scmp.le.s32.totalorder 1, %s15
      %p181 = scmp.lt.s32.totalorder %s15, 3
      %p182 = pnand %p180, %p181
      %p183 = pneg %p182
      // Predicated region
      $region9: #{tpu_custom_call.1} parent=5 // pred_check
        _
      $region10: #{tpu_custom_call.1} parent=5 // pred_check_branch
        %185 = sbr.rel (%p182) target = $region12
      $region11: #{tpu_custom_call.1} parent=5 // pred_region
        %s186 = ssub.s32 %s15, 1
        // Predicated region
        $region13: #{tpu_custom_call.1} parent=11 // pred_check
          %p187 = pneg %p62
        $region14: #{tpu_custom_call.1} parent=11 // pred_check_branch
          %189 = sbr.rel (%p187) target = $region16
        $region15: #{tpu_custom_call.1} parent=11 // pred_region
          _
        $region16: #{tpu_custom_call.1} parent=11 // pred_fallthru
          _
        // Predicated region
        $region17: #{tpu_custom_call.1} parent=11 // pred_check
          %p190 = pneg %p83
        $region18: #{tpu_custom_call.1} parent=11 // pred_check_branch
          %192 = sbr.rel (%p190) target = $region20
        $region19: #{tpu_custom_call.1} parent=11 // pred_region
          _
        $region20: #{tpu_custom_call.1} parent=11 // pred_fallthru
          _
        // Predicated region
        $region21: #{tpu_custom_call.1} parent=11 // pred_check
          %p193 = pneg %p104
        $region22: #{tpu_custom_call.1} parent=11 // pred_check_branch
          %195 = sbr.rel (%p193) target = $region24
        $region23: #{tpu_custom_call.1} parent=11 // pred_region
          _
        $region24: #{tpu_custom_call.1} parent=11 // pred_fallthru
          _
        // Predicated region
        $region25: #{tpu_custom_call.1} parent=11 // pred_check
          %p196 = pneg %p125
        $region26: #{tpu_custom_call.1} parent=11 // pred_check_branch
          %198 = sbr.rel (%p196) target = $region28
        $region27: #{tpu_custom_call.1} parent=11 // pred_region
          _
        $region28: #{tpu_custom_call.1} parent=11 // pred_fallthru
          _
        // Predicated region
        $region29: #{tpu_custom_call.1} parent=11 // pred_check
          %p199 = pneg %p146
        $region30: #{tpu_custom_call.1} parent=11 // pred_check_branch
          %201 = sbr.rel (%p199) target = $region32
        $region31: #{tpu_custom_call.1} parent=11 // pred_region
          _
        $region32: #{tpu_custom_call.1} parent=11 // pred_fallthru
          _
      $region12: #{tpu_custom_call.1} parent=5 // pred_fallthru
        _
      %p202 = scmp.lt.s32.totalorder %s15, 2
      // Predicated region
      $region33: #{tpu_custom_call.1} parent=5 // pred_check
        %p203 = pneg %p202
      $region34: #{tpu_custom_call.1} parent=5 // pred_check_branch
        %205 = sbr.rel (%p203) target = $region36
      $region35: #{tpu_custom_call.1} parent=5 // pred_region
        // Predicated region
        $region37: #{tpu_custom_call.1} parent=35 // pred_check
          %p206 = pneg %p35
        $region38: #{tpu_custom_call.1} parent=35 // pred_check_branch
          %208 = sbr.rel (%p206) target = $region40
        $region39: #{tpu_custom_call.1} parent=35 // pred_region
          %s209 = smul.u32 16, %s15
          %p210 = scmp.lt.s32.totalorder %s209, 31
          %s211 = scalar_select %p210, %s209, 31
          %s212 = smul.addr %s211, 8
          %s213 = scalar_lea.vmem %s0, %s212
          %s214 = smul.u32 16, %s15
        $region40: #{tpu_custom_call.1} parent=35 // pred_fallthru
          _
      $region36: #{tpu_custom_call.1} parent=5 // pred_fallthru
        _
      %p215 = scmp.le.s32.totalorder 1, %s15
      %p216 = scmp.lt.s32.totalorder %s15, 3
      %p217 = pnand %p215, %p216
      %p218 = pneg %p217
      // Predicated region
      $region41: #{tpu_custom_call.1} parent=5 // pred_check
        _
      $region42: #{tpu_custom_call.1} parent=5 // pred_check_branch
        %220 = sbr.rel (%p217) target = $region44
      $region43: #{tpu_custom_call.1} parent=5 // pred_region
        %s221 = ssub.s32 %s15, 1
        %s222 = smul.u32 16, %s20
        %p223 = scmp.lt.s32.totalorder %s222, 31
        %s224 = scalar_select %p223, %s222, 31
        %s225 = smul.addr %s224, 8
        %s226 = scalar_lea.vmem %s0, %s225
        %p227 = pneg %p41
        %p228 = pneg %p38
        %p229 = pneg %p62
        %p230 = pneg %p59
        %p231 = pneg %p83
        %p232 = pneg %p80
        %p233 = pneg %p104
        %p234 = pneg %p101
        %p235 = pneg %p125
        %p236 = pneg %p122
        %p237 = pneg %p146
        %p238 = pneg %p143
        %p239 = pneg %p172
        %p240 = pneg %p169
        %s241 = sand.u32 %s159, 1
        %s242 = scalar_lea.sflag [#allocation3], %s241
        %s243 = sand.u32 %s159, 1
        %s244 = smul.addr %s243, 8
        %s245 = scalar_lea.vmem [#allocation2], %s244
        %s246 = smul.u32 16, %s20
        %p247 = scmp.lt.s32.totalorder %s246, 31
        %s248 = scalar_select %p247, %s246, 31
        %s249 = smul.addr %s248, 8
        %s250 = scalar_lea.vmem %s0, %s249
        %s251 = smul.u32 16, %s20
        %v253 = vld [vmem:[%s250] sm:$0xff]
        %v254 = vld [vmem:[%s250 + $0x8] sm:$0xff]
        %v255 = vld [vmem:[%s250 + $0x10] sm:$0xff]
        %v256 = vld [vmem:[%s250 + $0x18] sm:$0xff]
        %v257 = vld [vmem:[%s250 + $0x20] sm:$0xff]
        %v258 = vld [vmem:[%s250 + $0x28] sm:$0xff]
        %v259 = vld [vmem:[%s250 + $0x30] sm:$0xff]
        %v260 = vld [vmem:[%s250 + $0x38] sm:$0xff]
        %v261 = vld [vmem:[%s250 + $0x40] sm:$0xff]
        %v262 = vld [vmem:[%s250 + $0x48] sm:$0xff]
        %v263 = vld [vmem:[%s250 + $0x50] sm:$0xff]
        %v264 = vld [vmem:[%s250 + $0x58] sm:$0xff]
        %v265 = vld [vmem:[%s250 + $0x60] sm:$0xff]
        %v266 = vld [vmem:[%s250 + $0x68] sm:$0xff]
        %v267 = vld [vmem:[%s250 + $0x70] sm:$0xff]
        %v268 = vld [vmem:[%s250 + $0x78] sm:$0xff]
        %v269 = vlaneseq
        %v270 = vand.u32 %v269, 127
        %271 = vset.pattern.permute.xlu0 0
        %272 = vperm.xlu0 %271, %v253
        %v273 = vpop.permute.xlu0 %272
        %274 = vset.pattern.permute.xlu0 0
        %275 = vperm.xlu0 %274, %v254
        %v276 = vpop.permute.xlu0 %275
        %277 = vset.pattern.permute.xlu0 0
        %278 = vperm.xlu0 %277, %v255
        %v279 = vpop.permute.xlu0 %278
        %280 = vset.pattern.permute.xlu0 0
        %281 = vperm.xlu0 %280, %v256
        %v282 = vpop.permute.xlu0 %281
        %283 = vset.pattern.permute.xlu0 0
        %284 = vperm.xlu0 %283, %v257
        %v285 = vpop.permute.xlu0 %284
        %286 = vset.pattern.permute.xlu0 0
        %287 = vperm.xlu0 %286, %v258
        %v288 = vpop.permute.xlu0 %287
        %289 = vset.pattern.permute.xlu0 0
        %290 = vperm.xlu0 %289, %v259
        %v291 = vpop.permute.xlu0 %290
        %292 = vset.pattern.permute.xlu0 0
        %293 = vperm.xlu0 %292, %v260
        %v294 = vpop.permute.xlu0 %293
        %295 = vset.pattern.permute.xlu0 0
        %296 = vperm.xlu0 %295, %v261
        %v297 = vpop.permute.xlu0 %296
        %298 = vset.pattern.permute.xlu0 0
        %299 = vperm.xlu0 %298, %v262
        %v300 = vpop.permute.xlu0 %299
        %301 = vset.pattern.permute.xlu0 0
        %302 = vperm.xlu0 %301, %v263
        %v303 = vpop.permute.xlu0 %302
        %304 = vset.pattern.permute.xlu0 0
        %305 = vperm.xlu0 %304, %v264
        %v306 = vpop.permute.xlu0 %305
        %307 = vset.pattern.permute.xlu0 0
        %308 = vperm.xlu0 %307, %v265
        %v309 = vpop.permute.xlu0 %308
        %310 = vset.pattern.permute.xlu0 0
        %311 = vperm.xlu0 %310, %v266
        %v312 = vpop.permute.xlu0 %311
        %313 = vset.pattern.permute.xlu0 0
        %314 = vperm.xlu0 %313, %v267
        %v315 = vpop.permute.xlu0 %314
        %316 = vset.pattern.permute.xlu0 0
        %317 = vperm.xlu0 %316, %v268
        %v318 = vpop.permute.xlu0 %317
        %vm319 = vcmp.eq.s32.totalorder %v273, %v270
        %vm320 = vcmp.eq.s32.totalorder %v276, %v270
        %vm321 = vcmp.eq.s32.totalorder %v279, %v270
        %vm322 = vcmp.eq.s32.totalorder %v282, %v270
        %vm323 = vcmp.eq.s32.totalorder %v285, %v270
        %vm324 = vcmp.eq.s32.totalorder %v288, %v270
        %vm325 = vcmp.eq.s32.totalorder %v291, %v270
        %vm326 = vcmp.eq.s32.totalorder %v294, %v270
        %vm327 = vcmp.eq.s32.totalorder %v297, %v270
        %vm328 = vcmp.eq.s32.totalorder %v300, %v270
        %vm329 = vcmp.eq.s32.totalorder %v303, %v270
        %vm330 = vcmp.eq.s32.totalorder %v306, %v270
        %vm331 = vcmp.eq.s32.totalorder %v309, %v270
        %vm332 = vcmp.eq.s32.totalorder %v312, %v270
        %vm333 = vcmp.eq.s32.totalorder %v315, %v270
        %vm334 = vcmp.eq.s32.totalorder %v318, %v270
        %v335 = vsel %vm319, 1, 0
        %v336 = vsel %vm320, 1, 0
        %v337 = vsel %vm321, 1, 0
        %v338 = vsel %vm322, 1, 0
        %v339 = vsel %vm323, 1, 0
        %v340 = vsel %vm324, 1, 0
        %v341 = vsel %vm325, 1, 0
        %v342 = vsel %vm326, 1, 0
        %v343 = vsel %vm327, 1, 0
        %v344 = vsel %vm328, 1, 0
        %v345 = vsel %vm329, 1, 0
        %v346 = vsel %vm330, 1, 0
        %v347 = vsel %vm331, 1, 0
        %v348 = vsel %vm332, 1, 0
        %v349 = vsel %vm333, 1, 0
        %v350 = vsel %vm334, 1, 0
        %v351 = vcvt.s32.f32 %v335
        %v352 = vcvt.s32.f32 %v336
        %v353 = vcvt.s32.f32 %v337
        %v354 = vcvt.s32.f32 %v338
        %v355 = vcvt.s32.f32 %v339
        %v356 = vcvt.s32.f32 %v340
        %v357 = vcvt.s32.f32 %v341
        %v358 = vcvt.s32.f32 %v342
        %v359 = vcvt.s32.f32 %v343
        %v360 = vcvt.s32.f32 %v344
        %v361 = vcvt.s32.f32 %v345
        %v362 = vcvt.s32.f32 %v346
        %v363 = vcvt.s32.f32 %v347
        %v364 = vcvt.s32.f32 %v348
        %v365 = vcvt.s32.f32 %v349
        %v366 = vcvt.s32.f32 %v350
        %v367 = vld [vmem:[%s1] sm:$0xff]
        %v368 = vld [vmem:[%s1 + $0x8] sm:$0xff]
        %v369 = vld [vmem:[%s1 + $0x10] sm:$0xff]
        %v370 = vld [vmem:[%s1 + $0x18] sm:$0xff]
        %v371 = vld [vmem:[%s1 + $0x20] sm:$0xff]
        %v372 = vld [vmem:[%s1 + $0x28] sm:$0xff]
        %v373 = vld [vmem:[%s1 + $0x30] sm:$0xff]
        %v374 = vld [vmem:[%s1 + $0x38] sm:$0xff]
        %v375 = vld [vmem:[%s1 + $0x40] sm:$0xff]
        %v376 = vld [vmem:[%s1 + $0x48] sm:$0xff]
        %v377 = vld [vmem:[%s1 + $0x50] sm:$0xff]
        %v378 = vld [vmem:[%s1 + $0x58] sm:$0xff]
        %v379 = vld [vmem:[%s1 + $0x60] sm:$0xff]
        %v380 = vld [vmem:[%s1 + $0x68] sm:$0xff]
        %v381 = vld [vmem:[%s1 + $0x70] sm:$0xff]
        %v382 = vld [vmem:[%s1 + $0x78] sm:$0xff]
        %383 = vmatprep.subr.mxu0 0.0
        %384 = vmatpush1.msra.mxu0 %v382
        %385 = vmatprep.subr.mxu0 0.0
        %386 = vmatpush1.msra.mxu0 %v381
        %387 = vmatprep.subr.mxu0 0.0
        %388 = vmatpush1.msra.mxu0 %v380
        %389 = vmatprep.subr.mxu0 0.0
        %390 = vmatpush1.msra.mxu0 %v379
        %391 = vmatprep.subr.mxu0 0.0
        %392 = vmatpush1.msra.mxu0 %v378
        %393 = vmatprep.subr.mxu0 0.0
        %394 = vmatpush1.msra.mxu0 %v377
        %395 = vmatprep.subr.mxu0 0.0
        %396 = vmatpush1.msra.mxu0 %v376
        %397 = vmatprep.subr.mxu0 0.0
        %398 = vmatpush1.msra.mxu0 %v375
        %399 = vmatprep.subr.mxu0 0.0
        %400 = vmatpush1.msra.mxu0 %v374
        %401 = vmatprep.subr.mxu0 0.0
        %402 = vmatpush1.msra.mxu0 %v373
        %403 = vmatprep.subr.mxu0 0.0
        %404 = vmatpush1.msra.mxu0 %v372
        %405 = vmatprep.subr.mxu0 0.0
        %406 = vmatpush1.msra.mxu0 %v371
        %407 = vmatprep.subr.mxu0 0.0
        %408 = vmatpush1.msra.mxu0 %v370
        %409 = vmatprep.subr.mxu0 0.0
        %410 = vmatpush1.msra.mxu0 %v369
        %411 = vmatprep.subr.mxu0 0.0
        %412 = vmatpush1.msra.mxu0 %v368
        %413 = vmatprep.subr.mxu0 0.0
        %414 = vmatpush1.msra.mxu0 %v367
        %415 = vmatprep.subr.mxu0 0.0
        %416 = vmatpush2.msra.mxu0 0.0
        %417 = vmatprep.subr.mxu0 0.0
        %418 = vmatpush2.msra.mxu0 0.0
        %419 = vmatprep.subr.mxu0 0.0
        %420 = vmatpush2.msra.mxu0 0.0
        %421 = vmatprep.subr.mxu0 0.0
        %422 = vmatpush2.msra.mxu0 0.0
        %423 = vmatprep.subr.mxu0 0.0
        %424 = vmatpush2.msra.mxu0 0.0
        %425 = vmatprep.subr.mxu0 0.0
        %426 = vmatpush2.msra.mxu0 0.0
        %427 = vmatprep.subr.mxu0 0.0
        %428 = vmatpush2.msra.mxu0 0.0
        %429 = vmatprep.subr.mxu0 0.0
        %430 = vmatpush2.msra.mxu0 0.0
        %431 = vmatprep.subr.mxu0 0.0
        %432 = vmatpush2.msra.mxu0 0.0
        %433 = vmatprep.subr.mxu0 0.0
        %434 = vmatpush2.msra.mxu0 0.0
        %435 = vmatprep.subr.mxu0 0.0
        %436 = vmatpush2.msra.mxu0 0.0
        %437 = vmatprep.subr.mxu0 0.0
        %438 = vmatpush2.msra.mxu0 0.0
        %439 = vmatprep.subr.mxu0 0.0
        %440 = vmatpush2.msra.mxu0 0.0
        %441 = vmatprep.subr.mxu0 0.0
        %442 = vmatpush2.msra.mxu0 0.0
        %443 = vmatprep.subr.mxu0 0.0
        %444 = vmatpush2.msra.mxu0 0.0
        %445 = vmatprep.subr.mxu0 0.0
        %446 = vmatpush2.msra.mxu0 0.0
        %447 = vmatprep.mubr.f32.mxu0 0.0
        %448 = vmatmul.mubr.f32.gmra.mxu0 %v351
        %v449 = vpop.f32.mrf.mxu0
        %v450 = vadd.f32 0.0, %v449
        %v451 = vpop.f32.mrf.mxu0
        %452 = vmatprep.mubr.f32.mxu0 0.0
        %453 = vmatmul.mubr.f32.gmra.mxu0 %v352
        %v454 = vpop.f32.mrf.mxu0
        %v455 = vadd.f32 0.0, %v454
        %v456 = vpop.f32.mrf.mxu0
        %457 = vmatprep.mubr.f32.mxu0 0.0
        %458 = vmatmul.mubr.f32.gmra.mxu0 %v353
        %v459 = vpop.f32.mrf.mxu0
        %v460 = vadd.f32 0.0, %v459
        %v461 = vpop.f32.mrf.mxu0
        %462 = vmatprep.mubr.f32.mxu0 0.0
        %463 = vmatmul.mubr.f32.gmra.mxu0 %v354
        %v464 = vpop.f32.mrf.mxu0
        %v465 = vadd.f32 0.0, %v464
        %v466 = vpop.f32.mrf.mxu0
        %467 = vmatprep.mubr.f32.mxu0 0.0
        %468 = vmatmul.mubr.f32.gmra.mxu0 %v355
        %v469 = vpop.f32.mrf.mxu0
        %v470 = vadd.f32 0.0, %v469
        %v471 = vpop.f32.mrf.mxu0
        %472 = vmatprep.mubr.f32.mxu0 0.0
        %473 = vmatmul.mubr.f32.gmra.mxu0 %v356
        %v474 = vpop.f32.mrf.mxu0
        %v475 = vadd.f32 0.0, %v474
        %v476 = vpop.f32.mrf.mxu0
        %477 = vmatprep.mubr.f32.mxu0 0.0
        %478 = vmatmul.mubr.f32.gmra.mxu0 %v357
        %v479 = vpop.f32.mrf.mxu0
        %v480 = vadd.f32 0.0, %v479
        %v481 = vpop.f32.mrf.mxu0
        %482 = vmatprep.mubr.f32.mxu0 0.0
        %483 = vmatmul.mubr.f32.gmra.mxu0 %v358
        %v484 = vpop.f32.mrf.mxu0
        %v485 = vadd.f32 0.0, %v484
        %v486 = vpop.f32.mrf.mxu0
        %487 = vmatprep.mubr.f32.mxu0 0.0
        %488 = vmatmul.mubr.f32.gmra.mxu0 %v359
        %v489 = vpop.f32.mrf.mxu0
        %v490 = vadd.f32 0.0, %v489
        %v491 = vpop.f32.mrf.mxu0
        %492 = vmatprep.mubr.f32.mxu0 0.0
        %493 = vmatmul.mubr.f32.gmra.mxu0 %v360
        %v494 = vpop.f32.mrf.mxu0
        %v495 = vadd.f32 0.0, %v494
        %v496 = vpop.f32.mrf.mxu0
        %497 = vmatprep.mubr.f32.mxu0 0.0
        %498 = vmatmul.mubr.f32.gmra.mxu0 %v361
        %v499 = vpop.f32.mrf.mxu0
        %v500 = vadd.f32 0.0, %v499
        %v501 = vpop.f32.mrf.mxu0
        %502 = vmatprep.mubr.f32.mxu0 0.0
        %503 = vmatmul.mubr.f32.gmra.mxu0 %v362
        %v504 = vpop.f32.mrf.mxu0
        %v505 = vadd.f32 0.0, %v504
        %v506 = vpop.f32.mrf.mxu0
        %507 = vmatprep.mubr.f32.mxu0 0.0
        %508 = vmatmul.mubr.f32.gmra.mxu0 %v363
        %v509 = vpop.f32.mrf.mxu0
        %v510 = vadd.f32 0.0, %v509
        %v511 = vpop.f32.mrf.mxu0
        %512 = vmatprep.mubr.f32.mxu0 0.0
        %513 = vmatmul.mubr.f32.gmra.mxu0 %v364
        %v514 = vpop.f32.mrf.mxu0
        %v515 = vadd.f32 0.0, %v514
        %v516 = vpop.f32.mrf.mxu0
        %517 = vmatprep.mubr.f32.mxu0 0.0
        %518 = vmatmul.mubr.f32.gmra.mxu0 %v365
        %v519 = vpop.f32.mrf.mxu0
        %v520 = vadd.f32 0.0, %v519
        %v521 = vpop.f32.mrf.mxu0
        %522 = vmatprep.mubr.f32.mxu0 0.0
        %523 = vmatmul.mubr.f32.gmra.mxu0 %v366
        %v524 = vpop.f32.mrf.mxu0
        %v525 = vadd.f32 0.0, %v524
        %v526 = vpop.f32.mrf.mxu0
        %527 = vdwg.mxu0
        %v528 = vld [vmem:[%s2] sm:$0xff]
        %v529 = vld [vmem:[%s2 + $0x8] sm:$0xff]
        %v530 = vld [vmem:[%s2 + $0x10] sm:$0xff]
        %v531 = vld [vmem:[%s2 + $0x18] sm:$0xff]
        %v532 = vld [vmem:[%s2 + $0x20] sm:$0xff]
        %v533 = vld [vmem:[%s2 + $0x28] sm:$0xff]
        %v534 = vld [vmem:[%s2 + $0x30] sm:$0xff]
        %v535 = vld [vmem:[%s2 + $0x38] sm:$0xff]
        %v536 = vld [vmem:[%s2 + $0x40] sm:$0xff]
        %v537 = vld [vmem:[%s2 + $0x48] sm:$0xff]
        %538 = vmatprep.subr.mxu0 0.0
        %539 = vmatpush1.msra.mxu0 %v525
        %540 = vmatprep.subr.mxu0 0.0
        %541 = vmatpush1.msra.mxu0 %v520
        %542 = vmatprep.subr.mxu0 0.0
        %543 = vmatpush1.msra.mxu0 %v515
        %544 = vmatprep.subr.mxu0 0.0
        %545 = vmatpush1.msra.mxu0 %v510
        %546 = vmatprep.subr.mxu0 0.0
        %547 = vmatpush1.msra.mxu0 %v505
        %548 = vmatprep.subr.mxu0 0.0
        %549 = vmatpush1.msra.mxu0 %v500
        %550 = vmatprep.subr.mxu0 0.0
        %551 = vmatpush1.msra.mxu0 %v495
        %552 = vmatprep.subr.mxu0 0.0
        %553 = vmatpush1.msra.mxu0 %v490
        %554 = vmatprep.subr.mxu0 0.0
        %555 = vmatpush1.msra.mxu0 %v485
        %556 = vmatprep.subr.mxu0 0.0
        %557 = vmatpush1.msra.mxu0 %v480
        %558 = vmatprep.subr.mxu0 0.0
        %559 = vmatpush1.msra.mxu0 %v475
        %560 = vmatprep.subr.mxu0 0.0
        %561 = vmatpush1.msra.mxu0 %v470
        %562 = vmatprep.subr.mxu0 0.0
        %563 = vmatpush1.msra.mxu0 %v465
        %564 = vmatprep.subr.mxu0 0.0
        %565 = vmatpush1.msra.mxu0 %v460
        %566 = vmatprep.subr.mxu0 0.0
        %567 = vmatpush1.msra.mxu0 %v455
        %568 = vmatprep.subr.mxu0 0.0
        %569 = vmatpush1.msra.mxu0 %v450
        %570 = vmatprep.subr.mxu0 0.0
        %571 = vmatpush2.msra.mxu0 0.0
        %572 = vmatprep.subr.mxu0 0.0
        %573 = vmatpush2.msra.mxu0 0.0
        %574 = vmatprep.subr.mxu0 0.0
        %575 = vmatpush2.msra.mxu0 0.0
        %576 = vmatprep.subr.mxu0 0.0
        %577 = vmatpush2.msra.mxu0 0.0
        %578 = vmatprep.subr.mxu0 0.0
        %579 = vmatpush2.msra.mxu0 0.0
        %580 = vmatprep.subr.mxu0 0.0
        %581 = vmatpush2.msra.mxu0 0.0
        %582 = vmatprep.subr.mxu0 0.0
        %583 = vmatpush2.msra.mxu0 0.0
        %584 = vmatprep.subr.mxu0 0.0
        %585 = vmatpush2.msra.mxu0 0.0
        %586 = vmatprep.subr.mxu0 0.0
        %587 = vmatpush2.msra.mxu0 0.0
        %588 = vmatprep.subr.mxu0 0.0
        %589 = vmatpush2.msra.mxu0 0.0
        %590 = vmatprep.subr.mxu0 0.0
        %591 = vmatpush2.msra.mxu0 0.0
        %592 = vmatprep.subr.mxu0 0.0
        %593 = vmatpush2.msra.mxu0 0.0
        %594 = vmatprep.subr.mxu0 0.0
        %595 = vmatpush2.msra.mxu0 0.0
        %596 = vmatprep.subr.mxu0 0.0
        %597 = vmatpush2.msra.mxu0 0.0
        %598 = vmatprep.subr.mxu0 0.0
        %599 = vmatpush2.msra.mxu0 0.0
        %600 = vmatprep.subr.mxu0 0.0
        %601 = vmatpush2.msra.mxu0 0.0
        %602 = vmatprep.mubr.f32.mxu0 0.0
        %603 = vmatmul.mubr.f32.gmra.mxu0 %v528
        %v604 = vpop.f32.mrf.mxu0
        %v605 = vadd.f32 0.0, %v604
        %v606 = vpop.f32.mrf.mxu0
        %607 = vmatprep.mubr.f32.mxu0 0.0
        %608 = vmatmul.mubr.f32.gmra.mxu0 %v529
        %v609 = vpop.f32.mrf.mxu0
        %v610 = vadd.f32 0.0, %v609
        %v611 = vpop.f32.mrf.mxu0
        %612 = vmatprep.mubr.f32.mxu0 0.0
        %613 = vmatmul.mubr.f32.gmra.mxu0 %v530
        %v614 = vpop.f32.mrf.mxu0
        %v615 = vadd.f32 0.0, %v614
        %v616 = vpop.f32.mrf.mxu0
        %617 = vmatprep.mubr.f32.mxu0 0.0
        %618 = vmatmul.mubr.f32.gmra.mxu0 %v531
        %v619 = vpop.f32.mrf.mxu0
        %v620 = vadd.f32 0.0, %v619
        %v621 = vpop.f32.mrf.mxu0
        %622 = vmatprep.mubr.f32.mxu0 0.0
        %623 = vmatmul.mubr.f32.gmra.mxu0 %v532
        %v624 = vpop.f32.mrf.mxu0
        %v625 = vadd.f32 0.0, %v624
        %v626 = vpop.f32.mrf.mxu0
        %627 = vmatprep.mubr.f32.mxu0 0.0
        %628 = vmatmul.mubr.f32.gmra.mxu0 %v533
        %v629 = vpop.f32.mrf.mxu0
        %v630 = vadd.f32 0.0, %v629
        %v631 = vpop.f32.mrf.mxu0
        %632 = vmatprep.mubr.f32.mxu0 0.0
        %633 = vmatmul.mubr.f32.gmra.mxu0 %v534
        %v634 = vpop.f32.mrf.mxu0
        %v635 = vadd.f32 0.0, %v634
        %v636 = vpop.f32.mrf.mxu0
        %637 = vmatprep.mubr.f32.mxu0 0.0
        %638 = vmatmul.mubr.f32.gmra.mxu0 %v535
        %v639 = vpop.f32.mrf.mxu0
        %v640 = vadd.f32 0.0, %v639
        %v641 = vpop.f32.mrf.mxu0
        %642 = vmatprep.mubr.f32.mxu0 0.0
        %643 = vmatmul.mubr.f32.gmra.mxu0 %v536
        %v644 = vpop.f32.mrf.mxu0
        %v645 = vadd.f32 0.0, %v644
        %v646 = vpop.f32.mrf.mxu0
        %647 = vmatprep.mubr.f32.mxu0 0.0
        %648 = vmatmul.mubr.f32.gmra.mxu0 %v537
        %v649 = vpop.f32.mrf.mxu0
        %v650 = vadd.f32 0.0, %v649
        %v651 = vpop.f32.mrf.mxu0
        %652 = vdwg.mxu0
        %661 = vrot.lane.b32.xlu0 %v610, 32
        %v662 = vpop.permute.xlu0 %661
        %663 = vrot.lane.b32.xlu0 %v615, 32
        %v664 = vpop.permute.xlu0 %663
        %665 = vrot.lane.b32.xlu0 %v620, 32
        %v666 = vpop.permute.xlu0 %665
        %667 = vrot.lane.b32.xlu0 %v625, 32
        %v668 = vpop.permute.xlu0 %667
        %669 = vrot.lane.b32.xlu0 %v630, 32
        %v670 = vpop.permute.xlu0 %669
        %671 = vrot.lane.b32.xlu0 %v635, 32
        %v672 = vpop.permute.xlu0 %671
        %673 = vrot.lane.b32.xlu0 %v640, 32
        %v674 = vpop.permute.xlu0 %673
        %675 = vrot.lane.b32.xlu0 %v645, 32
        %v676 = vpop.permute.xlu0 %675
        %686 = vrot.lane.b32.xlu0 %v615, 64
        %v687 = vpop.permute.xlu0 %686
        %688 = vrot.lane.b32.xlu0 %v620, 64
        %v689 = vpop.permute.xlu0 %688
        %690 = vrot.lane.b32.xlu0 %v625, 64
        %v691 = vpop.permute.xlu0 %690
        %692 = vrot.lane.b32.xlu0 %v630, 64
        %v693 = vpop.permute.xlu0 %692
        %694 = vrot.lane.b32.xlu0 %v635, 64
        %v695 = vpop.permute.xlu0 %694
        %696 = vrot.lane.b32.xlu0 %v640, 64
        %v697 = vpop.permute.xlu0 %696
        %698 = vrot.lane.b32.xlu0 %v645, 64
        %v699 = vpop.permute.xlu0 %698
        %700 = vrot.lane.b32.xlu0 %v650, 64
        %v701 = vpop.permute.xlu0 %700
        %vm710 = vcmask 261120
        %v711 = vsel %vm710, %v605, %v662
        %v712 = vsel %vm710, %v610, %v664
        %v713 = vsel %vm710, %v615, %v666
        %v714 = vsel %vm710, %v620, %v668
        %v715 = vsel %vm710, %v625, %v670
        %v716 = vsel %vm710, %v630, %v672
        %v717 = vsel %vm710, %v635, %v674
        %v718 = vsel %vm710, %v640, %v676
        %vm719 = vcmask 523264
        %v720 = vsel %vm719, %v711, %v687
        %v721 = vsel %vm719, %v712, %v689
        %v722 = vsel %vm719, %v713, %v691
        %v723 = vsel %vm719, %v714, %v693
        %v724 = vsel %vm719, %v715, %v695
        %v725 = vsel %vm719, %v716, %v697
        %v726 = vsel %vm719, %v717, %v699
        %v727 = vsel %vm719, %v718, %v701
        %v728 = vpack.c.bf16 %v721, %v720
        %v729 = vpack.c.bf16 %v723, %v722
        %v730 = vpack.c.bf16 %v725, %v724
        %v731 = vpack.c.bf16 %v727, %v726
        %v732 = vld [vmem:[%s3] sm:$0xf]
        %v733 = vld [vmem:[%s3 + $0x4] sm:$0xf]
        %v734 = vld [vmem:[%s3 + $0x8] sm:$0xf]
        %v735 = vld [vmem:[%s3 + $0xc] sm:$0xf]
        %v736 = vld [vmem:[%s3 + $0x10] sm:$0xf]
        %v737 = vld [vmem:[%s3 + $0x14] sm:$0xf]
        %v738 = vld [vmem:[%s3 + $0x18] sm:$0xf]
        %v739 = vld [vmem:[%s3 + $0x1c] sm:$0xf]
        %v740 = vld [vmem:[%s3 + $0x20] sm:$0xf]
        %v741 = vld [vmem:[%s3 + $0x24] sm:$0xf]
        %v742 = vld [vmem:[%s3 + $0x28] sm:$0xf]
        %v743 = vld [vmem:[%s3 + $0x2c] sm:$0xf]
        %v744 = vld [vmem:[%s4] sm:$0x1]
        %v746 = vlaneseq
        %v747 = vshrl.u32 %v746, 7
        %v748 = vsub.s32 0, %v747
        %v749 = vrot.slane %v744, %v748
        %v763 = vunpack.c.l.b16 %v732
        %v764 = vunpack.c.l.b16 %v733
        %v765 = vunpack.c.l.b16 %v734
        %v766 = vunpack.c.l.b16 %v735
        %v767 = vunpack.c.l.b16 %v736
        %v768 = vunpack.c.l.b16 %v737
        %v769 = vunpack.c.l.b16 %v738
        %v770 = vunpack.c.l.b16 %v739
        %v771 = vunpack.c.l.b16 %v740
        %v772 = vunpack.c.l.b16 %v741
        %v773 = vunpack.c.l.b16 %v742
        %v774 = vunpack.c.l.b16 %v743
        %v775 = vpack.c.b16 %v764, %v763
        %v776 = vpack.c.b16 %v766, %v765
        %v777 = vpack.c.b16 %v768, %v767
        %v778 = vpack.c.b16 %v770, %v769
        %v779 = vpack.c.b16 %v772, %v771
        %v780 = vpack.c.b16 %v774, %v773
        %vm787 = vcmask 785408
        %v789 = vsel %vm787, %v728, 0
        %v792 = vsel %vm787, %v729, 0
        %v795 = vsel %vm787, %v730, 0
        %v798 = vsel %vm787, %v731, 0
        %800 = vmatprep.subr.bf16.mxu0 0
        %801 = vmatpush1.bf16.msra.mxu0 0
        %802 = vmatprep.subr.bf16.mxu0 0
        %803 = vmatpush1.bf16.msra.mxu0 0
        %804 = vmatprep.subr.bf16.mxu0 0
        %805 = vmatpush1.bf16.msra.mxu0 %v780
        %806 = vmatprep.subr.bf16.mxu0 0
        %807 = vmatpush1.bf16.msra.mxu0 %v779
        %808 = vmatprep.subr.bf16.mxu0 0
        %809 = vmatpush1.bf16.msra.mxu0 %v778
        %810 = vmatprep.subr.bf16.mxu0 0
        %811 = vmatpush1.bf16.msra.mxu0 %v777
        %812 = vmatprep.subr.bf16.mxu0 0
        %813 = vmatpush1.bf16.msra.mxu0 %v776
        %814 = vmatprep.subr.bf16.mxu0 0
        %815 = vmatpush1.bf16.msra.mxu0 %v775
        %816 = vmatprep.subr.bf16.mxu0 0
        %817 = vmatpush2.bf16.msra.mxu0 0
        %818 = vmatprep.subr.bf16.mxu0 0
        %819 = vmatpush2.bf16.msra.mxu0 0
        %820 = vmatprep.subr.bf16.mxu0 0
        %821 = vmatpush2.bf16.msra.mxu0 0
        %822 = vmatprep.subr.bf16.mxu0 0
        %823 = vmatpush2.bf16.msra.mxu0 0
        %824 = vmatprep.subr.bf16.mxu0 0
        %825 = vmatpush2.bf16.msra.mxu0 0
        %826 = vmatprep.subr.bf16.mxu0 0
        %827 = vmatpush2.bf16.msra.mxu0 0
        %828 = vmatprep.subr.bf16.mxu0 0
        %829 = vmatpush2.bf16.msra.mxu0 0
        %830 = vmatprep.subr.bf16.mxu0 0
        %831 = vmatpush2.bf16.msra.mxu0 0
        %832 = vmatprep.mubr.bf16.mxu0 0
        %833 = vmatmul.mubr.bf16.gmra.mxu0 %v789
        %v834 = vpop.f32.mrf.mxu0
        %v835 = vadd.f32 %v749, %v834
        %v836 = vpop.f32.mrf.mxu0
        %v837 = vpop.f32.mrf.mxu0
        %v838 = vadd.f32 %v749, %v837
        %v839 = vpop.f32.mrf.mxu0
        %840 = vmatprep.mubr.bf16.mxu0 0
        %841 = vmatmul.mubr.bf16.gmra.mxu0 %v792
        %v842 = vpop.f32.mrf.mxu0
        %v843 = vadd.f32 %v749, %v842
        %v844 = vpop.f32.mrf.mxu0
        %v845 = vpop.f32.mrf.mxu0
        %v846 = vadd.f32 %v749, %v845
        %v847 = vpop.f32.mrf.mxu0
        %848 = vmatprep.mubr.bf16.mxu0 0
        %849 = vmatmul.mubr.bf16.gmra.mxu0 %v795
        %v850 = vpop.f32.mrf.mxu0
        %v851 = vadd.f32 %v749, %v850
        %v852 = vpop.f32.mrf.mxu0
        %v853 = vpop.f32.mrf.mxu0
        %v854 = vadd.f32 %v749, %v853
        %v855 = vpop.f32.mrf.mxu0
        %856 = vmatprep.mubr.bf16.mxu0 0
        %857 = vmatmul.mubr.bf16.gmra.mxu0 %v798
        %v858 = vpop.f32.mrf.mxu0
        %v859 = vadd.f32 %v749, %v858
        %v860 = vpop.f32.mrf.mxu0
        %v861 = vpop.f32.mrf.mxu0
        %v862 = vadd.f32 %v749, %v861
        %v863 = vpop.f32.mrf.mxu0
        %864 = vdwg.mxu0
        %v865 = vmax.f32 %v835, 0.0
        %v866 = vmax.f32 %v838, 0.0
        %v867 = vmax.f32 %v843, 0.0
        %v868 = vmax.f32 %v846, 0.0
        %v869 = vmax.f32 %v851, 0.0
        %v870 = vmax.f32 %v854, 0.0
        %v871 = vmax.f32 %v859, 0.0
        %v872 = vmax.f32 %v862, 0.0
        %v873 = vld [vmem:[%s5] sm:$0xff]
        %v874 = vld [vmem:[%s5 + $0x8] sm:$0xff]
        %v875 = vld [vmem:[%s5 + $0x10] sm:$0xff]
        %v876 = vld [vmem:[%s5 + $0x18] sm:$0xff]
        %v877 = vld [vmem:[%s5 + $0x20] sm:$0xff]
        %v878 = vld [vmem:[%s5 + $0x28] sm:$0xff]
        %v879 = vld [vmem:[%s5 + $0x30] sm:$0xff]
        %v880 = vld [vmem:[%s5 + $0x38] sm:$0xff]
        %v881 = vmul.f32 %v865, %v873
        %v882 = vmul.f32 %v866, %v874
        %v883 = vmul.f32 %v867, %v875
        %v884 = vmul.f32 %v868, %v876
        %v885 = vmul.f32 %v869, %v877
        %v886 = vmul.f32 %v870, %v878
        %v887 = vmul.f32 %v871, %v879
        %v888 = vmul.f32 %v872, %v880
        %v889 = vmax.f32 %v881, %v885
        %v890 = vmax.f32 %v882, %v886
        %v891 = vmax.f32 %v883, %v887
        %v892 = vmax.f32 %v884, %v888
        %v893 = vmax.f32 %v889, %v890
        %v894 = vmax.f32 %v891, %v892
        %v895 = vmax.f32 %v893, %v894
        %896 = vst [vmem:[%s245] sm:$0xff] %v895
        %s897 = sand.u32 %s159, 1
        %s898 = scalar_lea.sflag [#allocation3], %s897
        %s899 = sand.u32 %s159, 1
        %s900 = smul.addr %s899, 8
        %s901 = scalar_lea.vmem [#allocation2], %s900
        // Predicated region
        $region45: #{tpu_custom_call.1} parent=43 // pred_check
          %p902 = pneg %p169
        $region46: #{tpu_custom_call.1} parent=43 // pred_check_branch
          %904 = sbr.rel (%p902) target = $region48
        $region47: #{tpu_custom_call.1} parent=43 // pred_region
          %s906 = ssub.s32 128, 128
          %907 = vsyncadd %s898, %s906
          %s908 = smul.addr %s20, 128
          %s909 = scalar_lea.hbm %s6, %s908
          %s911 = sshll.u32 %s901, 4
          %s912 = int_to_ptr.vmem [resolvable:$true] %s911
          %914 = dma.vmem_to_hbm [thread:$0]  %s912, 128, %s909, %s898
        $region48: #{tpu_custom_call.1} parent=43 // pred_fallthru
          _
      $region44: #{tpu_custom_call.1} parent=5 // pred_fallthru
        _
      %p915 = scmp.le.s32.totalorder 2, %s15
      // Predicated region
      $region49: #{tpu_custom_call.1} parent=5 // pred_check
        %p916 = pneg %p915
      $region50: #{tpu_custom_call.1} parent=5 // pred_check_branch
        %918 = sbr.rel (%p916) target = $region52
      $region51: #{tpu_custom_call.1} parent=5 // pred_region
        %s919 = ssub.s32 %s15, 2
        // Predicated region
        $region53: #{tpu_custom_call.1} parent=51 // pred_check
          %p920 = pneg %p175
        $region54: #{tpu_custom_call.1} parent=51 // pred_check_branch
          %922 = sbr.rel (%p920) target = $region56
        $region55: #{tpu_custom_call.1} parent=51 // pred_region
          %s923 = sand.u32 %s160, 1
          %s924 = scalar_lea.sflag [#allocation3], %s923
          %s925 = sand.u32 %s160, 1
          %s926 = smul.addr %s925, 8
          %s927 = scalar_lea.vmem [#allocation2], %s926
          %928 = dma.done %s924, 128
        $region56: #{tpu_custom_call.1} parent=51 // pred_fallthru
          _
      $region52: #{tpu_custom_call.1} parent=5 // pred_fallthru
        _
    $region6: #{tpu_custom_call.1} parent=1 // loop_footer
      %s19 = sadd.s32 1, %s15
    $region7: #{tpu_custom_call.1} parent=1 // loop_footer_branch
      %14 = sbr.rel target = $region3
    $region8: #{tpu_custom_call.1} parent=1 // loop_exit
      _
    %929 = vsyncpa [#allocation3], 1
    %s930 = scalar_lea.sflag [#allocation3], 1
    %931 = vsyncpa %s930, 1

</llo_original>
